<compile_context>
chip_gen: v7x
topology: tpu7x:2x2x1
jax: 0.10.0
libtpu: 0.0.40
codegen_flags: <defaults>
</compile_context>

<pallas_src>
import jax
import jax.numpy as jnp
from jax.experimental import pallas as pl
from jax.experimental.pallas import tpu as pltpu


def _make_swizzle_kernel(outer, n_w, ph, pw):
    """Reorder pw-wide lane groups in the trailing dim:
         input order  (outer, n_w, ph, pw)
         output order (outer, ph, n_w, pw)
    Single load, one concatenate of static lane slices, single store.
    `outer` is 1 for the 4-D layout (n_h kept as a leading dim) and n_h for
    the folded lane-dense layout."""
    D = ph * pw
    row = n_w * D

    def kernel(x_ref, o_ref):
        x = x_ref[...]
        pieces = []
        for i in range(outer):
            base = i * row
            for r in range(ph):
                for nw in range(n_w):
                    s = base + nw * D + r * pw
                    pieces.append(x[..., s:s + pw])
        o_ref[...] = jnp.concatenate(pieces, axis=-1)

    return kernel


def _largest_divisor_under(C, cap, multiple_of=1):
    """Largest divisor of C that is <= cap and a multiple of `multiple_of`.
    Returns 0 if none exists."""
    for d in range(min(C, max(cap, 0)), 0, -1):
        if C % d == 0 and d % multiple_of == 0:
            return d
    return 0


def unpatchify(x, input_size, patch_size, stride):
    assert patch_size == stride, "Patch size and stride should be equal"
    B, L, D = x.shape
    n_h = input_size // patch_size
    n_w = n_h
    ph = pw = patch_size
    assert D == ph * pw, "token dim must equal patch_size**2"
    assert L % (n_h * n_w) == 0
    C = L // (n_h * n_w)
    H = W = input_size
    lane = n_w * D        # = ph * W : per-(channel, n_h-row) slab length
    HW = n_h * lane       # = H * W  : per-channel image length

    itemsize = jnp.dtype(x.dtype).itemsize
    budget = 4 * 1024 * 1024  # per-buffer VMEM budget (double-buffered by Pallas)

    compiler_params = pltpu.CompilerParams(
        dimension_semantics=("parallel", "parallel"))
    cost = pl.CostEstimate(flops=0, transcendentals=0,
                           bytes_accessed=2 * B * L * D * itemsize)

    # Prefer the folded, lane-dense layout when the unfolded last dim would be
    # narrower than a full vreg lane width (would cause masked partial stores).
    fold_nh = (lane % 128 != 0) and (HW % 128 == 0)
    if fold_nh:
        cap = max(1, budget // max(HW * itemsize, 1))
        if C <= cap:
            cb = C                      # full dim -> always legal as a block dim
        else:
            cb = _largest_divisor_under(C, cap, multiple_of=8)  # sublane rule
        if cb == 0:
            fold_nh = False             # fall back to the always-legal 4-D layout

    if fold_nh:
        x_in = x.reshape(B, C, HW)      # free: trailing-dim merge only
        kernel = _make_swizzle_kernel(n_h, n_w, ph, pw)
        out = pl.pallas_call(
            kernel,
            out_shape=jax.ShapeDtypeStruct((B, C, HW), x.dtype),
            grid=(B, C // cb),
            in_specs=[pl.BlockSpec((None, cb, HW), lambda b, cj: (b, cj, 0))],
            out_specs=pl.BlockSpec((None, cb, HW), lambda b, cj: (b, cj, 0)),
            compiler_params=compiler_params,
            cost_estimate=cost,
        )(x_in)
        return out.reshape(B, C, H, W)  # free: trailing-dim split only

    # General path: last two block dims equal the full array dims -> always legal,
    # so the channel block can be any divisor of C.
    x_in = x.reshape(B, C, n_h, lane)
    cap = max(1, budget // max(n_h * lane * itemsize, 1))
    cb = _largest_divisor_under(C, cap) or 1
    kernel = _make_swizzle_kernel(1, n_w, ph, pw)
    out = pl.pallas_call(
        kernel,
        out_shape=jax.ShapeDtypeStruct((B, C, n_h, ph * W), x.dtype),
        grid=(B, C // cb),
        in_specs=[pl.BlockSpec((None, cb, n_h, lane),
                               lambda b, cj: (b, cj, 0, 0))],
        out_specs=pl.BlockSpec((None, cb, n_h, ph * W),
                               lambda b, cj: (b, cj, 0, 0)),
        compiler_params=compiler_params,
        cost_estimate=cost,
    )(x_in)
    # free: (B, C, n_h, ph*W) -> (B, C, n_h*ph, W) = (B, C, H, W)
    return out.reshape(B, C, H, W)


def unpatchify_reference(x, input_size, patch_size):
    """Pure-JAX reference matching the einops rearrange semantics."""
    B, L, D = x.shape
    n_h = input_size // patch_size
    n_w = n_h
    C = L // (n_h * n_w)
    h = w = patch_size
    t = x.reshape(B, C, n_h, n_w, h, w)
    t = jnp.transpose(t, (0, 1, 2, 4, 3, 5))  # b c n_h h n_w w
    return t.reshape(B, C, n_h * h, n_w * w)


if __name__ == "__main__":
    # Module config: input_size=16, patch_size=stride=4 -> n_h=n_w=4, D=16
    input_size = 16
    patch_size = 4
    stride = 4
    B = 2
    C = 4
    n_h = input_size // patch_size
    L = C * n_h * n_h            # 64
    D = patch_size * patch_size  # 16

    key = jax.random.PRNGKey(0)
    x = jax.random.normal(key, (B, L, D), dtype=jnp.float32)

    out = unpatchify(x, input_size, patch_size, stride)
    out = jax.block_until_ready(out)

    ref = unpatchify_reference(x, input_size, patch_size)
    assert out.shape == (B, C, input_size, input_size), out.shape
    assert out.dtype == x.dtype
    assert jnp.array_equal(out, ref), "Pallas unpatchify mismatch vs reference"

    print("KERNEL_OK")
</pallas_src>

<mosaic_0001>
module attributes {stable_mosaic.version = 11 : i64} {
  func.func @kernel(%arg0: i32, %arg1: i32, %arg2: memref<1x4x256xf32, #tpu.memory_space<vmem>>, %arg3: memref<1x4x256xf32, #tpu.memory_space<vmem>>) attributes {dimension_semantics = [#tpu.dimension_semantics<parallel>, #tpu.dimension_semantics<parallel>], iteration_bounds = array<i64: 2, 1>, scalar_prefetch = 0 : i64, scratch_operands = 0 : i64, tpu.core_type = #tpu.core_type<tc>, window_params = [{transform_indices = @transform_0, window_bounds = array<i64: 1, 4, 256>}, {transform_indices = @transform_1, window_bounds = array<i64: 1, 4, 256>}]} {
    %c0 = arith.constant 0 : index
    %c0_0 = arith.constant 0 : index
    %c0_1 = arith.constant 0 : index
    %0 = vector.load %arg2[%c0, %c0_0, %c0_1] : memref<1x4x256xf32, #tpu.memory_space<vmem>>, vector<1x4x256xf32>
    %1 = vector.shape_cast %0 : vector<1x4x256xf32> to vector<4x256xf32>
    %2 = vector.extract_strided_slice %1 {offsets = [0, 0], sizes = [4, 4], strides = [1, 1]} : vector<4x256xf32> to vector<4x4xf32>
    %3 = vector.extract_strided_slice %1 {offsets = [0, 16], sizes = [4, 4], strides = [1, 1]} : vector<4x256xf32> to vector<4x4xf32>
    %4 = vector.extract_strided_slice %1 {offsets = [0, 32], sizes = [4, 4], strides = [1, 1]} : vector<4x256xf32> to vector<4x4xf32>
    %5 = vector.extract_strided_slice %1 {offsets = [0, 48], sizes = [4, 4], strides = [1, 1]} : vector<4x256xf32> to vector<4x4xf32>
    %6 = vector.extract_strided_slice %1 {offsets = [0, 4], sizes = [4, 4], strides = [1, 1]} : vector<4x256xf32> to vector<4x4xf32>
    %7 = vector.extract_strided_slice %1 {offsets = [0, 20], sizes = [4, 4], strides = [1, 1]} : vector<4x256xf32> to vector<4x4xf32>
    %8 = vector.extract_strided_slice %1 {offsets = [0, 36], sizes = [4, 4], strides = [1, 1]} : vector<4x256xf32> to vector<4x4xf32>
    %9 = vector.extract_strided_slice %1 {offsets = [0, 52], sizes = [4, 4], strides = [1, 1]} : vector<4x256xf32> to vector<4x4xf32>
    %10 = vector.extract_strided_slice %1 {offsets = [0, 8], sizes = [4, 4], strides = [1, 1]} : vector<4x256xf32> to vector<4x4xf32>
    %11 = vector.extract_strided_slice %1 {offsets = [0, 24], sizes = [4, 4], strides = [1, 1]} : vector<4x256xf32> to vector<4x4xf32>
    %12 = vector.extract_strided_slice %1 {offsets = [0, 40], sizes = [4, 4], strides = [1, 1]} : vector<4x256xf32> to vector<4x4xf32>
    %13 = vector.extract_strided_slice %1 {offsets = [0, 56], sizes = [4, 4], strides = [1, 1]} : vector<4x256xf32> to vector<4x4xf32>
    %14 = vector.extract_strided_slice %1 {offsets = [0, 12], sizes = [4, 4], strides = [1, 1]} : vector<4x256xf32> to vector<4x4xf32>
    %15 = vector.extract_strided_slice %1 {offsets = [0, 28], sizes = [4, 4], strides = [1, 1]} : vector<4x256xf32> to vector<4x4xf32>
    %16 = vector.extract_strided_slice %1 {offsets = [0, 44], sizes = [4, 4], strides = [1, 1]} : vector<4x256xf32> to vector<4x4xf32>
    %17 = vector.extract_strided_slice %1 {offsets = [0, 60], sizes = [4, 4], strides = [1, 1]} : vector<4x256xf32> to vector<4x4xf32>
    %18 = vector.extract_strided_slice %1 {offsets = [0, 64], sizes = [4, 4], strides = [1, 1]} : vector<4x256xf32> to vector<4x4xf32>
    %19 = vector.extract_strided_slice %1 {offsets = [0, 80], sizes = [4, 4], strides = [1, 1]} : vector<4x256xf32> to vector<4x4xf32>
    %20 = vector.extract_strided_slice %1 {offsets = [0, 96], sizes = [4, 4], strides = [1, 1]} : vector<4x256xf32> to vector<4x4xf32>
    %21 = vector.extract_strided_slice %1 {offsets = [0, 112], sizes = [4, 4], strides = [1, 1]} : vector<4x256xf32> to vector<4x4xf32>
    %22 = vector.extract_strided_slice %1 {offsets = [0, 68], sizes = [4, 4], strides = [1, 1]} : vector<4x256xf32> to vector<4x4xf32>
    %23 = vector.extract_strided_slice %1 {offsets = [0, 84], sizes = [4, 4], strides = [1, 1]} : vector<4x256xf32> to vector<4x4xf32>
    %24 = vector.extract_strided_slice %1 {offsets = [0, 100], sizes = [4, 4], strides = [1, 1]} : vector<4x256xf32> to vector<4x4xf32>
    %25 = vector.extract_strided_slice %1 {offsets = [0, 116], sizes = [4, 4], strides = [1, 1]} : vector<4x256xf32> to vector<4x4xf32>
    %26 = vector.extract_strided_slice %1 {offsets = [0, 72], sizes = [4, 4], strides = [1, 1]} : vector<4x256xf32> to vector<4x4xf32>
    %27 = vector.extract_strided_slice %1 {offsets = [0, 88], sizes = [4, 4], strides = [1, 1]} : vector<4x256xf32> to vector<4x4xf32>
    %28 = vector.extract_strided_slice %1 {offsets = [0, 104], sizes = [4, 4], strides = [1, 1]} : vector<4x256xf32> to vector<4x4xf32>
    %29 = vector.extract_strided_slice %1 {offsets = [0, 120], sizes = [4, 4], strides = [1, 1]} : vector<4x256xf32> to vector<4x4xf32>
    %30 = vector.extract_strided_slice %1 {offsets = [0, 76], sizes = [4, 4], strides = [1, 1]} : vector<4x256xf32> to vector<4x4xf32>
    %31 = vector.extract_strided_slice %1 {offsets = [0, 92], sizes = [4, 4], strides = [1, 1]} : vector<4x256xf32> to vector<4x4xf32>
    %32 = vector.extract_strided_slice %1 {offsets = [0, 108], sizes = [4, 4], strides = [1, 1]} : vector<4x256xf32> to vector<4x4xf32>
    %33 = vector.extract_strided_slice %1 {offsets = [0, 124], sizes = [4, 4], strides = [1, 1]} : vector<4x256xf32> to vector<4x4xf32>
    %34 = vector.extract_strided_slice %1 {offsets = [0, 128], sizes = [4, 4], strides = [1, 1]} : vector<4x256xf32> to vector<4x4xf32>
    %35 = vector.extract_strided_slice %1 {offsets = [0, 144], sizes = [4, 4], strides = [1, 1]} : vector<4x256xf32> to vector<4x4xf32>
    %36 = vector.extract_strided_slice %1 {offsets = [0, 160], sizes = [4, 4], strides = [1, 1]} : vector<4x256xf32> to vector<4x4xf32>
    %37 = vector.extract_strided_slice %1 {offsets = [0, 176], sizes = [4, 4], strides = [1, 1]} : vector<4x256xf32> to vector<4x4xf32>
    %38 = vector.extract_strided_slice %1 {offsets = [0, 132], sizes = [4, 4], strides = [1, 1]} : vector<4x256xf32> to vector<4x4xf32>
    %39 = vector.extract_strided_slice %1 {offsets = [0, 148], sizes = [4, 4], strides = [1, 1]} : vector<4x256xf32> to vector<4x4xf32>
    %40 = vector.extract_strided_slice %1 {offsets = [0, 164], sizes = [4, 4], strides = [1, 1]} : vector<4x256xf32> to vector<4x4xf32>
    %41 = vector.extract_strided_slice %1 {offsets = [0, 180], sizes = [4, 4], strides = [1, 1]} : vector<4x256xf32> to vector<4x4xf32>
    %42 = vector.extract_strided_slice %1 {offsets = [0, 136], sizes = [4, 4], strides = [1, 1]} : vector<4x256xf32> to vector<4x4xf32>
    %43 = vector.extract_strided_slice %1 {offsets = [0, 152], sizes = [4, 4], strides = [1, 1]} : vector<4x256xf32> to vector<4x4xf32>
    %44 = vector.extract_strided_slice %1 {offsets = [0, 168], sizes = [4, 4], strides = [1, 1]} : vector<4x256xf32> to vector<4x4xf32>
    %45 = vector.extract_strided_slice %1 {offsets = [0, 184], sizes = [4, 4], strides = [1, 1]} : vector<4x256xf32> to vector<4x4xf32>
    %46 = vector.extract_strided_slice %1 {offsets = [0, 140], sizes = [4, 4], strides = [1, 1]} : vector<4x256xf32> to vector<4x4xf32>
    %47 = vector.extract_strided_slice %1 {offsets = [0, 156], sizes = [4, 4], strides = [1, 1]} : vector<4x256xf32> to vector<4x4xf32>
    %48 = vector.extract_strided_slice %1 {offsets = [0, 172], sizes = [4, 4], strides = [1, 1]} : vector<4x256xf32> to vector<4x4xf32>
    %49 = vector.extract_strided_slice %1 {offsets = [0, 188], sizes = [4, 4], strides = [1, 1]} : vector<4x256xf32> to vector<4x4xf32>
    %50 = vector.extract_strided_slice %1 {offsets = [0, 192], sizes = [4, 4], strides = [1, 1]} : vector<4x256xf32> to vector<4x4xf32>
    %51 = vector.extract_strided_slice %1 {offsets = [0, 208], sizes = [4, 4], strides = [1, 1]} : vector<4x256xf32> to vector<4x4xf32>
    %52 = vector.extract_strided_slice %1 {offsets = [0, 224], sizes = [4, 4], strides = [1, 1]} : vector<4x256xf32> to vector<4x4xf32>
    %53 = vector.extract_strided_slice %1 {offsets = [0, 240], sizes = [4, 4], strides = [1, 1]} : vector<4x256xf32> to vector<4x4xf32>
    %54 = vector.extract_strided_slice %1 {offsets = [0, 196], sizes = [4, 4], strides = [1, 1]} : vector<4x256xf32> to vector<4x4xf32>
    %55 = vector.extract_strided_slice %1 {offsets = [0, 212], sizes = [4, 4], strides = [1, 1]} : vector<4x256xf32> to vector<4x4xf32>
    %56 = vector.extract_strided_slice %1 {offsets = [0, 228], sizes = [4, 4], strides = [1, 1]} : vector<4x256xf32> to vector<4x4xf32>
    %57 = vector.extract_strided_slice %1 {offsets = [0, 244], sizes = [4, 4], strides = [1, 1]} : vector<4x256xf32> to vector<4x4xf32>
    %58 = vector.extract_strided_slice %1 {offsets = [0, 200], sizes = [4, 4], strides = [1, 1]} : vector<4x256xf32> to vector<4x4xf32>
    %59 = vector.extract_strided_slice %1 {offsets = [0, 216], sizes = [4, 4], strides = [1, 1]} : vector<4x256xf32> to vector<4x4xf32>
    %60 = vector.extract_strided_slice %1 {offsets = [0, 232], sizes = [4, 4], strides = [1, 1]} : vector<4x256xf32> to vector<4x4xf32>
    %61 = vector.extract_strided_slice %1 {offsets = [0, 248], sizes = [4, 4], strides = [1, 1]} : vector<4x256xf32> to vector<4x4xf32>
    %62 = vector.extract_strided_slice %1 {offsets = [0, 204], sizes = [4, 4], strides = [1, 1]} : vector<4x256xf32> to vector<4x4xf32>
    %63 = vector.extract_strided_slice %1 {offsets = [0, 220], sizes = [4, 4], strides = [1, 1]} : vector<4x256xf32> to vector<4x4xf32>
    %64 = vector.extract_strided_slice %1 {offsets = [0, 236], sizes = [4, 4], strides = [1, 1]} : vector<4x256xf32> to vector<4x4xf32>
    %65 = vector.extract_strided_slice %1 {offsets = [0, 252], sizes = [4, 4], strides = [1, 1]} : vector<4x256xf32> to vector<4x4xf32>
    %66 = tpu.concatenate %2, %3, %4, %5, %6, %7, %8, %9, %10, %11, %12, %13, %14, %15, %16, %17 in 1 : vector<4x4xf32>, vector<4x4xf32>, vector<4x4xf32>, vector<4x4xf32>, vector<4x4xf32>, vector<4x4xf32>, vector<4x4xf32>, vector<4x4xf32>, vector<4x4xf32>, vector<4x4xf32>, vector<4x4xf32>, vector<4x4xf32>, vector<4x4xf32>, vector<4x4xf32>, vector<4x4xf32>, vector<4x4xf32> -> vector<4x64xf32>
    %67 = tpu.concatenate %18, %19, %20, %21, %22, %23, %24, %25, %26, %27, %28, %29, %30, %31, %32, %33 in 1 : vector<4x4xf32>, vector<4x4xf32>, vector<4x4xf32>, vector<4x4xf32>, vector<4x4xf32>, vector<4x4xf32>, vector<4x4xf32>, vector<4x4xf32>, vector<4x4xf32>, vector<4x4xf32>, vector<4x4xf32>, vector<4x4xf32>, vector<4x4xf32>, vector<4x4xf32>, vector<4x4xf32>, vector<4x4xf32> -> vector<4x64xf32>
    %68 = tpu.concatenate %34, %35, %36, %37, %38, %39, %40, %41, %42, %43, %44, %45, %46, %47, %48, %49 in 1 : vector<4x4xf32>, vector<4x4xf32>, vector<4x4xf32>, vector<4x4xf32>, vector<4x4xf32>, vector<4x4xf32>, vector<4x4xf32>, vector<4x4xf32>, vector<4x4xf32>, vector<4x4xf32>, vector<4x4xf32>, vector<4x4xf32>, vector<4x4xf32>, vector<4x4xf32>, vector<4x4xf32>, vector<4x4xf32> -> vector<4x64xf32>
    %69 = tpu.concatenate %50, %51, %52, %53, %54, %55, %56, %57, %58, %59, %60, %61, %62, %63, %64, %65 in 1 : vector<4x4xf32>, vector<4x4xf32>, vector<4x4xf32>, vector<4x4xf32>, vector<4x4xf32>, vector<4x4xf32>, vector<4x4xf32>, vector<4x4xf32>, vector<4x4xf32>, vector<4x4xf32>, vector<4x4xf32>, vector<4x4xf32>, vector<4x4xf32>, vector<4x4xf32>, vector<4x4xf32>, vector<4x4xf32> -> vector<4x64xf32>
    %70 = tpu.concatenate %66, %67, %68, %69 in 1 : vector<4x64xf32>, vector<4x64xf32>, vector<4x64xf32>, vector<4x64xf32> -> vector<4x256xf32>
    %c0_2 = arith.constant 0 : index
    %c0_3 = arith.constant 0 : index
    %c0_4 = arith.constant 0 : index
    %71 = vector.load %arg3[%c0_2, %c0_3, %c0_4] : memref<1x4x256xf32, #tpu.memory_space<vmem>>, vector<1x4x256xf32>
    %72 = vector.shape_cast %71 : vector<1x4x256xf32> to vector<4x256xf32>
    %73 = vector.shape_cast %70 : vector<4x256xf32> to vector<1x4x256xf32>
    tpu.vector_store %arg3[%c0_2, %c0_3, %c0_4], %73 {strides = array<i32>} : memref<1x4x256xf32, #tpu.memory_space<vmem>>, vector<1x4x256xf32>,
    return
  }
  func.func @transform_0(%arg0: i32, %arg1: i32) -> (i32, i32, i32) {
    %c0_i32 = arith.constant 0 : i32
    %c0_i32_0 = arith.constant 0 : i32
    return %arg0, %arg1, %c0_i32 : i32, i32, i32
  }
  func.func @transform_1(%arg0: i32, %arg1: i32) -> (i32, i32, i32) {
    %c0_i32 = arith.constant 0 : i32
    %c0_i32_0 = arith.constant 0 : i32
    return %arg0, %arg1, %c0_i32 : i32, i32, i32
  }
}

</mosaic_0001>

<llo_original>
// kernel: tpu_custom_call.1
$region0: #{tpu_custom_call.1}
  #allocation0 [shape = 'u32[]', space=smem, size = 0x4, offset = 0x4, fixed_abs, tag = 'smem constant byte address 0x4 - core index']
  #allocation1 [shape = 'u32[144,128]{1,0:T(1,128)}', space=vmem, size = 0x12000, scoped, tag = 'internal scratch']
  %s0 = inlined_call_operand.hbm [shape: f32[2,4,256], index: 0, kind: input, shape index: {}]
  %s1 = inlined_call_operand.hbm [shape: f32[2,4,256], index: 1, kind: output, shape index: {}]
  %s2 = sld [smem:[#allocation0]]
  $region41: #{tpu_custom_call.1} parent=0
    _
  %s4 = ssub.s32 1, %s2
  %s5 = scalar_select 0, %s4, %s2
  $region1: #{tpu_custom_call.1} parent=0
    #allocation2 [shape = 'u8[8192]{0}', space=vmem, size = 0x2000, scoped, tag = 'input window, operand 0']
    #allocation3 [shape = 's32[2]{0}', space=sflag, size = 0x8, scoped, tag = 'scoped memory for tpu_custom_call.1']
    #allocation4 [shape = 's32[2]{0}', space=sflag, size = 0x8, scoped, tag = 'scoped memory for tpu_custom_call.1']
    #allocation5 [shape = 'u8[8192]{0}', space=vmem, size = 0x2000, scoped, tag = 'output window, operand 0']
    %6 = vsyncpa [#allocation3], 0
    %s7 = scalar_lea.sflag [#allocation3], 1
    %8 = vsyncpa %s7, 0
    %9 = vsyncpa [#allocation4], 0
    %s10 = scalar_lea.sflag [#allocation4], 1
    %11 = vsyncpa %s10, 0
    loop: start=0, step=1, limit=4
    $region2: #{tpu_custom_call.1} parent=1 // loop_pre_header
      _
    $region3: #{tpu_custom_call.1} parent=1 // loop_header
      %s13 = sphi 0, %s17
      %p14 = scmp.ge.s32.totalorder %s13, 4
      %s20 = sphi 0, %s32
      %s21 = sphi 0, %s28
      %s22 = sphi 0, %s20
      %s23 = sphi 0, %s21
      %s24 = sphi 0, %s22
      %s25 = sphi 0, %s23
      %s37 = sphi 0, %s39
      %s40 = sphi 0, %s37
      %s41 = sphi 0, %s40
      %s57 = sphi 0, %s41
      %s65 = sphi 0, %s67
      %s68 = sphi 0, %s65
      %s69 = sphi 0, %s68
      %s85 = sphi 0, %s69
    $region4: #{tpu_custom_call.1} parent=1 // loop_header_branch
      %16 = sbr.rel (%p14) target = $region8
    $region5: #{tpu_custom_call.1} parent=1 // loop_body
      %s18 = ssub.s32 %s13, 1
      %s19 = ssub.s32 %s13, 2
      %s26 = sadd.s32 1, %s21
      %p27 = scmp.ge.s32.totalorder %s26, 1
      %s28 = scalar_select %p27, 0, %s26
      %s29 = sadd.s32 1, %s20
      %s30 = scalar_select %p27, %s29, %s20
      %p31 = scmp.ge.s32.totalorder %s30, 2
      %s32 = scalar_select %p31, 0, %s30
      %s33 = ssub.s32 %s20, %s32
      %s34 = ssub.s32 %s21, %s28
      %s35 = sor.u32 %s33, %s34
      %p36 = scmp.eq.s32.totalorder %s35, 0
      %s38 = sadd.s32 %s37, 1
      %s39 = scalar_select %p36, %s37, %s38
      %p42 = pneg %p36
      %p43 = scmp.eq.s32.totalorder %s13, 1
      %p44 = por %p42, %p43
      %p45 = scmp.ne.s32.totalorder %s37, %s40
      %p46 = scmp.eq.s32.totalorder %s13, 0
      %p47 = por %p45, %p46
      %p48 = scmp.ne.s32.totalorder %s37, %s40
      %p49 = scmp.eq.s32.totalorder %s18, 1
      %p50 = por %p48, %p49
      %p51 = scmp.ne.s32.totalorder %s40, %s41
      %p52 = scmp.eq.s32.totalorder %s18, 0
      %p53 = por %p51, %p52
      %p54 = scmp.ne.s32.totalorder %s40, %s41
      %p55 = scmp.eq.s32.totalorder %s19, 1
      %p56 = por %p54, %p55
      %p58 = scmp.ne.s32.totalorder %s41, %s57
      %p59 = scmp.eq.s32.totalorder %s19, 0
      %p60 = por %p58, %p59
      %s61 = ssub.s32 %s20, %s32
      %s62 = ssub.s32 %s21, %s28
      %s63 = sor.u32 %s61, %s62
      %p64 = scmp.eq.s32.totalorder %s63, 0
      %s66 = sadd.s32 %s65, 1
      %s67 = scalar_select %p64, %s65, %s66
      %p70 = pneg %p64
      %p71 = scmp.eq.s32.totalorder %s13, 1
      %p72 = por %p70, %p71
      %p73 = scmp.ne.s32.totalorder %s65, %s68
      %p74 = scmp.eq.s32.totalorder %s13, 0
      %p75 = por %p73, %p74
      %p76 = scmp.ne.s32.totalorder %s65, %s68
      %p77 = scmp.eq.s32.totalorder %s18, 1
      %p78 = por %p76, %p77
      %p79 = scmp.ne.s32.totalorder %s68, %s69
      %p80 = scmp.eq.s32.totalorder %s18, 0
      %p81 = por %p79, %p80
      %p82 = scmp.ne.s32.totalorder %s68, %s69
      %p83 = scmp.eq.s32.totalorder %s19, 1
      %p84 = por %p82, %p83
      %p86 = scmp.ne.s32.totalorder %s69, %s85
      %p87 = scmp.eq.s32.totalorder %s19, 0
      %p88 = por %p86, %p87
      %p89 = scmp.le.s32.totalorder 1, %s13
      %p90 = scmp.lt.s32.totalorder %s13, 3
      %p91 = pnand %p89, %p90
      %p92 = pneg %p91
      // Predicated region
      $region9: #{tpu_custom_call.1} parent=5 // pred_check
        _
      $region10: #{tpu_custom_call.1} parent=5 // pred_check_branch
        %94 = sbr.rel (%p91) target = $region12
      $region11: #{tpu_custom_call.1} parent=5 // pred_region
        %s95 = ssub.s32 %s13, 1
      $region12: #{tpu_custom_call.1} parent=5 // pred_fallthru
        _
      %p96 = scmp.lt.s32.totalorder %s13, 2
      // Predicated region
      $region13: #{tpu_custom_call.1} parent=5 // pred_check
        %p97 = pneg %p96
      $region14: #{tpu_custom_call.1} parent=5 // pred_check_branch
        %99 = sbr.rel (%p97) target = $region16
      $region15: #{tpu_custom_call.1} parent=5 // pred_region
        // Predicated region
        $region17: #{tpu_custom_call.1} parent=15 // pred_check
          %p100 = pneg %p47
        $region18: #{tpu_custom_call.1} parent=15 // pred_check_branch
          %102 = sbr.rel (%p100) target = $region20
        $region19: #{tpu_custom_call.1} parent=15 // pred_region
          %s103 = sand.u32 %s37, 1
          %s104 = scalar_lea.sflag [#allocation3], %s103
          %s105 = sand.u32 %s37, 1
          %s106 = smul.addr %s105, 8
          %s107 = scalar_lea.vmem [#allocation2], %s106
          %s109 = ssub.s32 128, 128
          %110 = vsyncadd %s104, %s109
          %s111 = smul.addr %s21, 2
          %s112 = smul.addr %s20, 2
          %s113 = sadd.s32 %s111, %s112
          %s114 = smul.addr %s113, 64
          %s115 = scalar_lea.hbm %s0, %s114
          %s117 = sshll.u32 %s107, 4
          %s118 = int_to_ptr.vmem [resolvable:$true] %s117
          %120 = dma.hbm_to_vmem [thread:$0]  %s115, 128, %s118, %s104
        $region20: #{tpu_custom_call.1} parent=15 // pred_fallthru
          _
      $region16: #{tpu_custom_call.1} parent=5 // pred_fallthru
        _
      %p121 = scmp.le.s32.totalorder 1, %s13
      %p122 = scmp.lt.s32.totalorder %s13, 3
      %p123 = pnand %p121, %p122
      %p124 = pneg %p123
      // Predicated region
      $region21: #{tpu_custom_call.1} parent=5 // pred_check
        _
      $region22: #{tpu_custom_call.1} parent=5 // pred_check_branch
        %126 = sbr.rel (%p123) target = $region24
      $region23: #{tpu_custom_call.1} parent=5 // pred_region
        %s127 = ssub.s32 %s13, 1
        %s128 = sand.u32 %s40, 1
        %s129 = scalar_lea.sflag [#allocation3], %s128
        %s130 = sand.u32 %s40, 1
        %s131 = smul.addr %s130, 8
        %s132 = scalar_lea.vmem [#allocation2], %s131
        // Predicated region
        $region25: #{tpu_custom_call.1} parent=23 // pred_check
          %p133 = pneg %p53
        $region26: #{tpu_custom_call.1} parent=23 // pred_check_branch
          %135 = sbr.rel (%p133) target = $region28
        $region27: #{tpu_custom_call.1} parent=23 // pred_region
          %136 = dma.done %s129, 128
        $region28: #{tpu_custom_call.1} parent=23 // pred_fallthru
          _
        %s137 = sand.u32 %s40, 1
        %s138 = scalar_lea.sflag [#allocation3], %s137
        %s139 = sand.u32 %s40, 1
        %s140 = smul.addr %s139, 8
        %s141 = scalar_lea.vmem [#allocation2], %s140
        %p142 = pneg %p53
        %p143 = pneg %p50
        %p144 = pneg %p81
        %p145 = pneg %p78
        %s146 = sand.u32 %s68, 1
        %s147 = scalar_lea.sflag [#allocation4], %s146
        %s148 = sand.u32 %s68, 1
        %s149 = smul.addr %s148, 8
        %s150 = scalar_lea.vmem [#allocation5], %s149
        %v151 = vld [vmem:[%s132] sm:$0xff]
        %153 = vrot.lane.b32.xlu0 %v151, 116
        %v154 = vpop.permute.xlu0 %153
        %156 = vrot.lane.b32.xlu0 %v151, 104
        %v157 = vpop.permute.xlu0 %156
        %159 = vrot.lane.b32.xlu0 %v151, 92
        %v160 = vpop.permute.xlu0 %159
        %162 = vrot.lane.b32.xlu0 %v151, 12
        %v163 = vpop.permute.xlu0 %162
        %165 = vrot.lane.b32.xlu0 %v151, 24
        %v166 = vpop.permute.xlu0 %165
        %168 = vrot.lane.b32.xlu0 %v151, 36
        %v169 = vpop.permute.xlu0 %168
        %vm171 = vcmask 31744
        %v172 = vsel %vm171, %v151, %v154
        %vm173 = vcmask 64512
        %v174 = vsel %vm173, %v172, %v157
        %vm175 = vcmask 97280
        %v176 = vsel %vm175, %v174, %v160
        %vm177 = vcmask 130048
        %v178 = vsel %vm177, %v176, %v163
        %vm179 = vcmask 162816
        %v180 = vsel %vm179, %v178, %v151
        %vm181 = vcmask 195584
        %v182 = vsel %vm181, %v180, %v154
        %vm183 = vcmask 228352
        %v184 = vsel %vm183, %v182, %v157
        %vm185 = vcmask 261120
        %v186 = vsel %vm185, %v184, %v166
        %vm187 = vcmask 293888
        %v188 = vsel %vm187, %v186, %v163
        %vm189 = vcmask 326656
        %v190 = vsel %vm189, %v188, %v151
        %vm191 = vcmask 359424
        %v192 = vsel %vm191, %v190, %v154
        %vm193 = vcmask 392192
        %v194 = vsel %vm193, %v192, %v169
        %vm195 = vcmask 424960
        %v196 = vsel %vm195, %v194, %v166
        %vm197 = vcmask 457728
        %v198 = vsel %vm197, %v196, %v163
        %vm199 = vcmask 490496
        %v200 = vsel %vm199, %v198, %v151
        %201 = vrot.lane.b32.xlu0 %v151, 64
        %v202 = vpop.permute.xlu0 %201
        %204 = vrot.lane.b32.xlu0 %v151, 52
        %v205 = vpop.permute.xlu0 %204
        %207 = vrot.lane.b32.xlu0 %v151, 40
        %v208 = vpop.permute.xlu0 %207
        %210 = vrot.lane.b32.xlu0 %v151, 28
        %v211 = vpop.permute.xlu0 %210
        %213 = vrot.lane.b32.xlu0 %v151, 76
        %v214 = vpop.permute.xlu0 %213
        %216 = vrot.lane.b32.xlu0 %v151, 88
        %v217 = vpop.permute.xlu0 %216
        %219 = vrot.lane.b32.xlu0 %v151, 100
        %v220 = vpop.permute.xlu0 %219
        %v222 = vsel %vm171, %v202, %v205
        %v223 = vsel %vm173, %v222, %v208
        %v224 = vsel %vm175, %v223, %v211
        %v225 = vsel %vm177, %v224, %v214
        %v226 = vsel %vm179, %v225, %v202
        %v227 = vsel %vm181, %v226, %v205
        %v228 = vsel %vm183, %v227, %v208
        %v229 = vsel %vm185, %v228, %v217
        %v230 = vsel %vm187, %v229, %v214
        %v231 = vsel %vm189, %v230, %v202
        %v232 = vsel %vm191, %v231, %v205
        %v233 = vsel %vm193, %v232, %v220
        %v234 = vsel %vm195, %v233, %v217
        %v235 = vsel %vm197, %v234, %v214
        %v236 = vsel %vm199, %v235, %v202
        %v237 = vcombine.high %v151, %v151
        %239 = vrot.lane.b32.xlu0 %v237, 116
        %v240 = vpop.permute.xlu0 %239
        %242 = vrot.lane.b32.xlu0 %v237, 104
        %v243 = vpop.permute.xlu0 %242
        %245 = vrot.lane.b32.xlu0 %v237, 92
        %v246 = vpop.permute.xlu0 %245
        %248 = vrot.lane.b32.xlu0 %v237, 12
        %v249 = vpop.permute.xlu0 %248
        %251 = vrot.lane.b32.xlu0 %v237, 24
        %v252 = vpop.permute.xlu0 %251
        %254 = vrot.lane.b32.xlu0 %v237, 36
        %v255 = vpop.permute.xlu0 %254
        %v257 = vsel %vm171, %v237, %v240
        %v258 = vsel %vm173, %v257, %v243
        %v259 = vsel %vm175, %v258, %v246
        %v260 = vsel %vm177, %v259, %v249
        %v261 = vsel %vm179, %v260, %v237
        %v262 = vsel %vm181, %v261, %v240
        %v263 = vsel %vm183, %v262, %v243
        %v264 = vsel %vm185, %v263, %v252
        %v265 = vsel %vm187, %v264, %v249
        %v266 = vsel %vm189, %v265, %v237
        %v267 = vsel %vm191, %v266, %v240
        %v268 = vsel %vm193, %v267, %v255
        %v269 = vsel %vm195, %v268, %v252
        %v270 = vsel %vm197, %v269, %v249
        %v271 = vsel %vm199, %v270, %v237
        %272 = vrot.lane.b32.xlu0 %v237, 64
        %v273 = vpop.permute.xlu0 %272
        %275 = vrot.lane.b32.xlu0 %v237, 52
        %v276 = vpop.permute.xlu0 %275
        %278 = vrot.lane.b32.xlu0 %v237, 40
        %v279 = vpop.permute.xlu0 %278
        %281 = vrot.lane.b32.xlu0 %v237, 28
        %v282 = vpop.permute.xlu0 %281
        %284 = vrot.lane.b32.xlu0 %v237, 76
        %v285 = vpop.permute.xlu0 %284
        %287 = vrot.lane.b32.xlu0 %v237, 88
        %v288 = vpop.permute.xlu0 %287
        %290 = vrot.lane.b32.xlu0 %v237, 100
        %v291 = vpop.permute.xlu0 %290
        %v293 = vsel %vm171, %v273, %v276
        %v294 = vsel %vm173, %v293, %v279
        %v295 = vsel %vm175, %v294, %v282
        %v296 = vsel %vm177, %v295, %v285
        %v297 = vsel %vm179, %v296, %v273
        %v298 = vsel %vm181, %v297, %v276
        %v299 = vsel %vm183, %v298, %v279
        %v300 = vsel %vm185, %v299, %v288
        %v301 = vsel %vm187, %v300, %v285
        %v302 = vsel %vm189, %v301, %v273
        %v303 = vsel %vm191, %v302, %v276
        %v304 = vsel %vm193, %v303, %v291
        %v305 = vsel %vm195, %v304, %v288
        %v306 = vsel %vm197, %v305, %v285
        %v307 = vsel %vm199, %v306, %v273
        %309 = vrot.lane.b32.xlu0 %v236, 64
        %v310 = vpop.permute.xlu0 %309
        %313 = vrot.lane.b32.xlu0 %v307, 64
        %v314 = vpop.permute.xlu0 %313
        %vm316 = vcmask 523264
        %v317 = vsel %vm316, %v200, %v310
        %v318 = vsel %vm316, %v271, %v314
        %v321 = vcombine.low %v317, %v318
        %323 = vst [vmem:[%s150] sm:$0xff] %v321
        %s324 = sand.u32 %s68, 1
        %s325 = scalar_lea.sflag [#allocation4], %s324
        %s326 = sand.u32 %s68, 1
        %s327 = smul.addr %s326, 8
        %s328 = scalar_lea.vmem [#allocation5], %s327
        // Predicated region
        $region29: #{tpu_custom_call.1} parent=23 // pred_check
          %p329 = pneg %p78
        $region30: #{tpu_custom_call.1} parent=23 // pred_check_branch
          %331 = sbr.rel (%p329) target = $region32
        $region31: #{tpu_custom_call.1} parent=23 // pred_region
          %s333 = ssub.s32 128, 128
          %334 = vsyncadd %s325, %s333
          %s335 = smul.addr %s23, 2
          %s336 = smul.addr %s22, 2
          %s337 = sadd.s32 %s335, %s336
          %s338 = smul.addr %s337, 64
          %s339 = scalar_lea.hbm %s1, %s338
          %s341 = sshll.u32 %s328, 4
          %s342 = int_to_ptr.vmem [resolvable:$true] %s341
          %344 = dma.vmem_to_hbm [thread:$0]  %s342, 128, %s339, %s325
        $region32: #{tpu_custom_call.1} parent=23 // pred_fallthru
          _
      $region24: #{tpu_custom_call.1} parent=5 // pred_fallthru
        _
      %p345 = scmp.le.s32.totalorder 2, %s13
      // Predicated region
      $region33: #{tpu_custom_call.1} parent=5 // pred_check
        %p346 = pneg %p345
      $region34: #{tpu_custom_call.1} parent=5 // pred_check_branch
        %348 = sbr.rel (%p346) target = $region36
      $region35: #{tpu_custom_call.1} parent=5 // pred_region
        %s349 = ssub.s32 %s13, 2
        // Predicated region
        $region37: #{tpu_custom_call.1} parent=35 // pred_check
          %p350 = pneg %p84
        $region38: #{tpu_custom_call.1} parent=35 // pred_check_branch
          %352 = sbr.rel (%p350) target = $region40
        $region39: #{tpu_custom_call.1} parent=35 // pred_region
          %s353 = sand.u32 %s69, 1
          %s354 = scalar_lea.sflag [#allocation4], %s353
          %s355 = sand.u32 %s69, 1
          %s356 = smul.addr %s355, 8
          %s357 = scalar_lea.vmem [#allocation5], %s356
          %358 = dma.done %s354, 128
        $region40: #{tpu_custom_call.1} parent=35 // pred_fallthru
          _
      $region36: #{tpu_custom_call.1} parent=5 // pred_fallthru
        _
    $region6: #{tpu_custom_call.1} parent=1 // loop_footer
      %s17 = sadd.s32 1, %s13
    $region7: #{tpu_custom_call.1} parent=1 // loop_footer_branch
      %12 = sbr.rel target = $region3
    $region8: #{tpu_custom_call.1} parent=1 // loop_exit
      _
    %359 = vsyncpa [#allocation3], 1
    %s360 = scalar_lea.sflag [#allocation3], 1
    %361 = vsyncpa %s360, 1
    %362 = vsyncpa [#allocation4], 1
    %s363 = scalar_lea.sflag [#allocation4], 1
    %364 = vsyncpa %s363, 1

</llo_original>
